<compile_context>
chip_gen: v5e
topology: v5e:2x2
jax: 0.10.0
libtpu: 0.0.40
codegen_flags: <defaults>
</compile_context>

<pallas_src>
import jax
import jax.numpy as jnp
from jax import lax
from jax.experimental import pallas as pl
from jax.experimental.pallas import tpu as pltpu


def _round_up(x, m):
    return (x + m - 1) // m * m


# ----------------------------------------------------------------------------
# Fused kernel
#   idx_ref : (RT, L) int32  global (offset-rebased) indices, -1 == invalid
#   tbl_ref : (VT, D) f32    one vocab tile of the concatenated table
#   out_ref : (RT, D) f32    resident across the vocab axis -> accumulator
# grid = (num_row_tiles, num_vocab_tiles); vocab axis is the reduction.
# ----------------------------------------------------------------------------
def _fused_emb_kernel(idx_ref, tbl_ref, out_ref):
    v = pl.program_id(1)
    vt = tbl_ref.shape[0]
    idx = idx_ref[...]                                     # (RT, L) int32
    rt, n_slots = idx.shape

    @pl.when(v == 0)
    def _():
        out_ref[...] = jnp.zeros_like(out_ref)

    # Rebase indices to this vocab tile: valid hits land in [0, VT); the -1
    # sentinel and hits belonging to other tiles stay outside that range.
    local = idx - v * vt                                   # (RT, L) cheap
    col = lax.broadcasted_iota(jnp.int32, (rt, vt), 1)     # (RT, VT)

    # Count matrix: cm[r, j] = #slots of row r hitting local column j.
    cm = jnp.zeros((rt, vt), jnp.float32)
    for l in range(n_slots):                               # L small & static
        cm = cm + (col == local[:, l][:, None]).astype(jnp.float32)

    out_ref[...] += jnp.dot(cm, tbl_ref[...],
                            preferred_element_type=jnp.float32)

    @pl.when(v == pl.num_programs(1) - 1)
    def _():
        # Mean denominator from the indices (L-wide reduce).  Rows with no
        # valid slot divide by 1 and stay exactly 0, matching
        # nn.EmbeddingBag(padding_idx=0, mode='mean').
        cnt = jnp.sum((idx >= 0).astype(jnp.float32), axis=1, keepdims=True)
        out_ref[...] = out_ref[...] / jnp.maximum(cnt, 1.0)


# ----------------------------------------------------------------------------
# Single pallas_call for ALL features
# ----------------------------------------------------------------------------
def fused_embedding_lookup(global_idx, table,
                           *, vmem_limit_bytes=32 * 1024 * 1024):
    """global_idx: (R, L) int32 with -1 sentinel; table: (V, D) float32.
    Returns (R, D) float32: mean over the valid gathered rows per row."""
    R, L = global_idx.shape
    V, D = table.shape

    # Row tile: multiple of 8 sublanes, capped at 256 (MXU-sized).
    RT = _round_up(R, 8) if R <= 256 else 256
    R_pad = _round_up(R, RT)
    # Vocab tile: stream the concatenated table in bounded chunks so the
    # double-buffered working set stays small on v5e/v6e/v7x alike.
    VT = _round_up(V, 8) if V <= 512 else 512
    V_pad = _round_up(V, VT)

    if R_pad != R:
        global_idx = jnp.pad(global_idx, ((0, R_pad - R), (0, 0)),
                             constant_values=-1)
    if V_pad != V:
        table = jnp.pad(table, ((0, V_pad - V), (0, 0)))

    grid = (R_pad // RT, V_pad // VT)
    out = pl.pallas_call(
        _fused_emb_kernel,
        out_shape=jax.ShapeDtypeStruct((R_pad, D), jnp.float32),
        grid=grid,
        in_specs=[
            # Indices: same block across the vocab axis -> fetched once per
            # row tile (block index does not change along v).
            pl.BlockSpec((RT, L), lambda r, v: (r, 0)),
            # Table: streamed tile-by-tile over the vocab (reduction) axis.
            pl.BlockSpec((VT, D), lambda r, v: (v, 0)),
        ],
        # Output block resident across the vocab axis -> used as accumulator.
        out_specs=pl.BlockSpec((RT, D), lambda r, v: (r, 0)),
        compiler_params=pltpu.CompilerParams(
            dimension_semantics=("parallel", "arbitrary"),
            vmem_limit_bytes=vmem_limit_bytes),
    )(global_idx.astype(jnp.int32), table.astype(jnp.float32))
    return out[:R]


# ----------------------------------------------------------------------------
# EmbeddingLayer forward (cat_emb=False): stack per group, concat groups dim=1
#   one_hot_x  : (B, F1)     int32
#   multi_hot_x: (F2, B, L)  int32, 0 == padding
#   returns    : (B, F1+F2, D) float32
# ----------------------------------------------------------------------------
def embedding_layer_forward(one_hot_x, multi_hot_x,
                            one_hot_tables, multi_hot_tables):
    one_hot_tables = list(one_hot_tables)
    multi_hot_tables = list(multi_hot_tables)
    tables = one_hot_tables + multi_hot_tables
    assert len(tables) >= 1
    D = tables[0].shape[1]
    assert all(t.shape[1] == D for t in tables), "stack needs equal emb dims"

    B = one_hot_x.shape[0] if one_hot_x is not None else multi_hot_x.shape[1]
    L = multi_hot_x.shape[2] if multi_hot_x is not None else 1

    # Per-feature row offsets into the concatenated (V_sum, D) table.
    offsets, acc = [], 0
    for t in tables:
        offsets.append(acc)
        acc += t.shape[0]
    big_table = jnp.concatenate(tables, axis=0)            # (V_sum, D)

    parts = []
    f = 0
    if one_hot_x is not None and one_hot_tables:
        F1 = one_hot_x.shape[1]
        off1 = jnp.asarray(offsets[:F1], jnp.int32)                   # (F1,)
        g1 = one_hot_x.astype(jnp.int32) + off1[None, :]              # (B, F1)
        slots1 = jnp.concatenate(
            [g1[..., None],
             jnp.full((B, F1, L - 1), -1, jnp.int32)], axis=-1)       # (B, F1, L)
        parts.append(slots1)
        f += F1
    if multi_hot_x is not None and multi_hot_tables:
        F2 = multi_hot_x.shape[0]
        off2 = jnp.asarray(offsets[f:f + F2], jnp.int32)              # (F2,)
        raw = jnp.transpose(multi_hot_x, (1, 0, 2)).astype(jnp.int32)  # (B, F2, L)
        g2 = jnp.where(raw != 0, raw + off2[None, :, None], -1)       # padding_idx=0
        parts.append(g2)
        f += F2
    F = f
    global_idx = jnp.concatenate(parts, axis=1).reshape(B * F, L)     # row = b*F + f

    out = fused_embedding_lookup(global_idx, big_table)               # (B*F, D)
    return out.reshape(B, F, D)


# ----------------------------------------------------------------------------
# Pure-JAX reference (mirrors the torch module)
# ----------------------------------------------------------------------------
def _reference(one_hot_x, multi_hot_x, one_hot_tables, multi_hot_tables):
    oh = jnp.stack([one_hot_tables[i][one_hot_x[:, i]]
                    for i in range(one_hot_x.shape[1])], axis=1)
    mh_list = []
    for i in range(multi_hot_x.shape[0]):
        idx = multi_hot_x[i]                               # (B, L)
        tbl = multi_hot_tables[i]
        gathered = tbl[idx]                                # (B, L, D)
        mask = (idx != 0).astype(jnp.float32)[..., None]
        s = jnp.sum(gathered * mask, axis=1)
        c = jnp.maximum(jnp.sum(mask, axis=1), 1.0)
        mh_list.append(s / c)
    mh = jnp.stack(mh_list, axis=1)
    return jnp.concatenate([oh, mh], axis=1)


if __name__ == "__main__":
    key = jax.random.PRNGKey(0)
    B, L, D = 4, 5, 32
    one_hot_fea_list = [10, 20]      # vocab sizes (table rows = vocab + 1)
    multi_hot_fea_list = [15, 7]

    keys = jax.random.split(key, 8)

    # Deterministic parameter init (torch.nn.Embedding default ~ N(0, 1)).
    one_hot_tables = [
        jax.random.normal(keys[i], (v + 1, D), jnp.float32)
        for i, v in enumerate(one_hot_fea_list)
    ]
    multi_hot_tables = []
    for j, v in enumerate(multi_hot_fea_list):
        t = jax.random.normal(keys[2 + j], (v + 1, D), jnp.float32)
        # padding_idx=0 row zeroed (torch zeroes the padding row at init)
        t = t.at[0].set(0.0)
        multi_hot_tables.append(t)

    # Inputs
    one_hot_x = jnp.stack(
        [jax.random.randint(keys[4 + i], (B,), 0, v + 1)
         for i, v in enumerate(one_hot_fea_list)], axis=1).astype(jnp.int32)    # (B, F1)
    multi_hot_x = jnp.stack(
        [jax.random.randint(keys[6 + j], (B, L), 0, v + 1)
         for j, v in enumerate(multi_hot_fea_list)], axis=0).astype(jnp.int32)  # (F2, B, L)

    out = embedding_layer_forward(one_hot_x, multi_hot_x,
                                  one_hot_tables, multi_hot_tables)
    out = jax.block_until_ready(out)

    ref = _reference(one_hot_x, multi_hot_x, one_hot_tables, multi_hot_tables)
    assert out.shape == (B, len(one_hot_fea_list) + len(multi_hot_fea_list), D)
    assert jnp.allclose(out, ref, atol=1e-5, rtol=1e-5), "mismatch vs reference"

    print("KERNEL_OK")
</pallas_src>

<mosaic_0001>
module attributes {stable_mosaic.version = 11 : i64} {
  func.func @_fused_emb_kernel(%arg0: i32, %arg1: i32, %arg2: memref<16x5xi32, #tpu.memory_space<vmem>>, %arg3: memref<56x32xf32, #tpu.memory_space<vmem>>, %arg4: memref<16x32xf32, #tpu.memory_space<vmem>>) attributes {dimension_semantics = [#tpu.dimension_semantics<parallel>, #tpu.dimension_semantics<arbitrary>], iteration_bounds = array<i64: 1, 1>, scalar_prefetch = 0 : i64, scratch_operands = 0 : i64, tpu.core_type = #tpu.core_type<tc>, window_params = [{transform_indices = @transform_0, window_bounds = array<i64: 16, 5>}, {transform_indices = @transform_1, window_bounds = array<i64: 56, 32>}, {transform_indices = @transform_2, window_bounds = array<i64: 16, 32>}]} {
    %c0 = arith.constant 0 : index
    %c0_0 = arith.constant 0 : index
    %0 = vector.load %arg2[%c0, %c0_0] : memref<16x5xi32, #tpu.memory_space<vmem>>, vector<16x5xi32>
    %c0_i32 = arith.constant 0 : i32
    %1 = arith.cmpi eq, %arg1, %c0_i32 : i32
    %2 = arith.extui %1 : i1 to i32
    %c0_i32_1 = arith.constant 0 : i32
    %3 = arith.cmpi ne, %2, %c0_i32_1 : i32
    scf.if %3 {
      %cst_11 = arith.constant 0.000000e+00 : f32
      %57 = vector.broadcast %cst_11 : f32 to vector<16x32xf32>
      %c0_12 = arith.constant 0 : index
      %c0_13 = arith.constant 0 : index
      %58 = vector.load %arg4[%c0_12, %c0_13] : memref<16x32xf32, #tpu.memory_space<vmem>>, vector<16x32xf32>
      tpu.vector_store %arg4[%c0_12, %c0_13], %57 {strides = array<i32>} : memref<16x32xf32, #tpu.memory_space<vmem>>, vector<16x32xf32>,
    } else {
    }
    %c56_i32 = arith.constant 56 : i32
    %4 = arith.muli %arg1, %c56_i32 : i32
    %5 = vector.broadcast %4 : i32 to vector<16x5xi32>
    %6 = arith.subi %0, %5 : vector<16x5xi32>
    %7 = tpu.iota {dimensions = array<i32: 1>} : vector<16x56xi32>
    %cst = arith.constant 0.000000e+00 : f32
    %8 = vector.broadcast %cst : f32 to vector<16x56xf32>
    %9 = vector.extract_strided_slice %6 {offsets = [0, 0], sizes = [16, 1], strides = [1, 1]} : vector<16x5xi32> to vector<16x1xi32>
    %10 = vector.shape_cast %9 : vector<16x1xi32> to vector<16xi32>
    %11 = vector.shape_cast %10 : vector<16xi32> to vector<16x1xi32>
    %12 = vector.broadcast %11 : vector<16x1xi32> to vector<16x56xi32>
    %13 = arith.cmpi eq, %7, %12 : vector<16x56xi32>
    %14 = arith.extui %13 : vector<16x56xi1> to vector<16x56xi32>
    %15 = arith.sitofp %14 : vector<16x56xi32> to vector<16x56xf32>
    %16 = arith.addf %8, %15 : vector<16x56xf32>
    %17 = vector.extract_strided_slice %6 {offsets = [0, 1], sizes = [16, 1], strides = [1, 1]} : vector<16x5xi32> to vector<16x1xi32>
    %18 = vector.shape_cast %17 : vector<16x1xi32> to vector<16xi32>
    %19 = vector.shape_cast %18 : vector<16xi32> to vector<16x1xi32>
    %20 = vector.broadcast %19 : vector<16x1xi32> to vector<16x56xi32>
    %21 = arith.cmpi eq, %7, %20 : vector<16x56xi32>
    %22 = arith.extui %21 : vector<16x56xi1> to vector<16x56xi32>
    %23 = arith.sitofp %22 : vector<16x56xi32> to vector<16x56xf32>
    %24 = arith.addf %16, %23 : vector<16x56xf32>
    %25 = vector.extract_strided_slice %6 {offsets = [0, 2], sizes = [16, 1], strides = [1, 1]} : vector<16x5xi32> to vector<16x1xi32>
    %26 = vector.shape_cast %25 : vector<16x1xi32> to vector<16xi32>
    %27 = vector.shape_cast %26 : vector<16xi32> to vector<16x1xi32>
    %28 = vector.broadcast %27 : vector<16x1xi32> to vector<16x56xi32>
    %29 = arith.cmpi eq, %7, %28 : vector<16x56xi32>
    %30 = arith.extui %29 : vector<16x56xi1> to vector<16x56xi32>
    %31 = arith.sitofp %30 : vector<16x56xi32> to vector<16x56xf32>
    %32 = arith.addf %24, %31 : vector<16x56xf32>
    %33 = vector.extract_strided_slice %6 {offsets = [0, 3], sizes = [16, 1], strides = [1, 1]} : vector<16x5xi32> to vector<16x1xi32>
    %34 = vector.shape_cast %33 : vector<16x1xi32> to vector<16xi32>
    %35 = vector.shape_cast %34 : vector<16xi32> to vector<16x1xi32>
    %36 = vector.broadcast %35 : vector<16x1xi32> to vector<16x56xi32>
    %37 = arith.cmpi eq, %7, %36 : vector<16x56xi32>
    %38 = arith.extui %37 : vector<16x56xi1> to vector<16x56xi32>
    %39 = arith.sitofp %38 : vector<16x56xi32> to vector<16x56xf32>
    %40 = arith.addf %32, %39 : vector<16x56xf32>
    %41 = vector.extract_strided_slice %6 {offsets = [0, 4], sizes = [16, 1], strides = [1, 1]} : vector<16x5xi32> to vector<16x1xi32>
    %42 = vector.shape_cast %41 : vector<16x1xi32> to vector<16xi32>
    %43 = vector.shape_cast %42 : vector<16xi32> to vector<16x1xi32>
    %44 = vector.broadcast %43 : vector<16x1xi32> to vector<16x56xi32>
    %45 = arith.cmpi eq, %7, %44 : vector<16x56xi32>
    %46 = arith.extui %45 : vector<16x56xi1> to vector<16x56xi32>
    %47 = arith.sitofp %46 : vector<16x56xi32> to vector<16x56xf32>
    %48 = arith.addf %40, %47 : vector<16x56xf32>
    %c0_2 = arith.constant 0 : index
    %c0_3 = arith.constant 0 : index
    %49 = vector.load %arg4[%c0_2, %c0_3] : memref<16x32xf32, #tpu.memory_space<vmem>>, vector<16x32xf32>
    %c0_4 = arith.constant 0 : index
    %c0_5 = arith.constant 0 : index
    %50 = vector.load %arg3[%c0_4, %c0_5] : memref<56x32xf32, #tpu.memory_space<vmem>>, vector<56x32xf32>
    %cst_6 = arith.constant dense<0.000000e+00> : vector<16x32xf32>
    %51 = tpu.matmul %48, %50, %cst_6 {dimension_numbers = #tpu.dot_dimension_numbers<[1], [0], [0], [1], [0, 0, 1, 1], [], []>} : vector<16x56xf32>, vector<56x32xf32>, vector<16x32xf32> -> vector<16x32xf32>
    %52 = arith.addf %49, %51 : vector<16x32xf32>
    %c0_7 = arith.constant 0 : index
    %c0_8 = arith.constant 0 : index
    %53 = vector.load %arg4[%c0_7, %c0_8] : memref<16x32xf32, #tpu.memory_space<vmem>>, vector<16x32xf32>
    tpu.vector_store %arg4[%c0_7, %c0_8], %52 {strides = array<i32>} : memref<16x32xf32, #tpu.memory_space<vmem>>, vector<16x32xf32>,
    %c0_i32_9 = arith.constant 0 : i32
    %54 = arith.cmpi eq, %arg1, %c0_i32_9 : i32
    %55 = arith.extui %54 : i1 to i32
    %c0_i32_10 = arith.constant 0 : i32
    %56 = arith.cmpi ne, %55, %c0_i32_10 : i32
    scf.if %56 {
      %c0_i32_11 = arith.constant 0 : i32
      %57 = vector.broadcast %c0_i32_11 : i32 to vector<16x5xi32>
      %58 = arith.cmpi sge, %0, %57 : vector<16x5xi32>
      %59 = arith.extui %58 : vector<16x5xi1> to vector<16x5xi32>
      %60 = arith.sitofp %59 : vector<16x5xi32> to vector<16x5xf32>
      %cst_12 = arith.constant dense<0.000000e+00> : vector<16xf32>
      %61 = vector.multi_reduction <add>, %60, %cst_12 [1] : vector<16x5xf32> to vector<16xf32>
      %62 = vector.shape_cast %61 : vector<16xf32> to vector<16x1xf32>
      %c0_13 = arith.constant 0 : index
      %c0_14 = arith.constant 0 : index
      %63 = vector.load %arg4[%c0_13, %c0_14] : memref<16x32xf32, #tpu.memory_space<vmem>>, vector<16x32xf32>
      %cst_15 = arith.constant 1.000000e+00 : f32
      %64 = vector.broadcast %cst_15 : f32 to vector<16x1xf32>
      %65 = arith.maximumf %62, %64 : vector<16x1xf32>
      %66 = vector.broadcast %65 : vector<16x1xf32> to vector<16x32xf32>
      %67 = arith.divf %63, %66 : vector<16x32xf32>
      %c0_16 = arith.constant 0 : index
      %c0_17 = arith.constant 0 : index
      %68 = vector.load %arg4[%c0_16, %c0_17] : memref<16x32xf32, #tpu.memory_space<vmem>>, vector<16x32xf32>
      tpu.vector_store %arg4[%c0_16, %c0_17], %67 {strides = array<i32>} : memref<16x32xf32, #tpu.memory_space<vmem>>, vector<16x32xf32>,
    } else {
    }
    return
  }
  func.func @transform_0(%arg0: i32, %arg1: i32) -> (i32, i32) {
    %c0_i32 = arith.constant 0 : i32
    %c0_i32_0 = arith.constant 0 : i32
    return %arg0, %c0_i32 : i32, i32
  }
  func.func @transform_1(%arg0: i32, %arg1: i32) -> (i32, i32) {
    %c0_i32 = arith.constant 0 : i32
    %c0_i32_0 = arith.constant 0 : i32
    return %arg1, %c0_i32 : i32, i32
  }
  func.func @transform_2(%arg0: i32, %arg1: i32) -> (i32, i32) {
    %c0_i32 = arith.constant 0 : i32
    %c0_i32_0 = arith.constant 0 : i32
    return %arg0, %c0_i32 : i32, i32
  }
}

</mosaic_0001>

<llo_original>
// kernel: tpu_custom_call.1
$region0: #{tpu_custom_call.1}
  #allocation0 [shape = 'u32[]', space=smem, size = 0x4, offset = 0x4, fixed_abs, tag = 'smem constant byte address 0x4 - core index']
  #allocation1 [shape = 'u32[72,128]{1,0:T(1,128)}', space=vmem, size = 0x9000, scoped, tag = 'internal scratch']
  %s0 = inlined_call_operand.vmem [shape: s32[16,5], index: 0, kind: input, shape index: {}]
  %s1 = inlined_call_operand.vmem [shape: f32[56,32], index: 1, kind: input, shape index: {}]
  %s2 = inlined_call_operand.hbm [shape: f32[16,32], index: 2, kind: output, shape index: {}]
  %s3 = sld [smem:[#allocation0]]
  $region26: #{tpu_custom_call.1} parent=0
    _
  %s5 = ssub.s32 1, %s3
  %s6 = scalar_select 0, %s5, %s3
  $region1: #{tpu_custom_call.1} parent=0
    #allocation2 [shape = 'u8[8192]{0}', space=vmem, size = 0x2000, scoped, tag = 'output window, operand 0, single buffered']
    #allocation3 [shape = 's32[1]{0}', space=sflag, size = 0x4, scoped, tag = 'scoped memory for tpu_custom_call.1']
    %7 = vsyncpa [#allocation3], 0
    // Predicated region
    $region2: #{tpu_custom_call.1} parent=1 // pred_check
      _
    $region3: #{tpu_custom_call.1} parent=1 // pred_check_branch
      %9 = sbr.rel (0) target = $region5
    $region4: #{tpu_custom_call.1} parent=1 // pred_region
      _
    $region5: #{tpu_custom_call.1} parent=1 // pred_fallthru
      _
    // Predicated region
    $region6: #{tpu_custom_call.1} parent=1 // pred_check
      _
    $region7: #{tpu_custom_call.1} parent=1 // pred_check_branch
      %11 = sbr.rel (0) target = $region9
    $region8: #{tpu_custom_call.1} parent=1 // pred_region
      _
    $region9: #{tpu_custom_call.1} parent=1 // pred_fallthru
      _
    %v12 = vld [vmem:[%s0] sm:$0xff]
    %v13 = vld [vmem:[%s0 + $0x8] sm:$0xff]
    %p14 = scmp.eq.s32.totalorder 0, 0
    // Predicated region
    $region10: #{tpu_custom_call.1} parent=1 // pred_check
      %p15 = pneg %p14
    $region11: #{tpu_custom_call.1} parent=1 // pred_check_branch
      %17 = sbr.rel (%p15) target = $region13
    $region12: #{tpu_custom_call.1} parent=1 // pred_region
      %vm18 = vcmask 261120
      %19 = vst.msk [vmem:[#allocation2] sm:$0xff] %vm18, 0.0
      %20 = vst.msk [vmem:[#allocation2 + $0x8] sm:$0xff] %vm18, 0.0
    $region13: #{tpu_custom_call.1} parent=1 // pred_fallthru
      _
    %s21 = smul.u32 0, 56
    %v22 = vstv %s21
    %v23 = vsub.s32 %v12, %v22
    %v24 = vsub.s32 %v13, %v22
    %v25 = vlaneseq
    %v26 = vand.u32 %v25, 127
    %27 = vset.pattern.permute.xlu0 0
    %28 = vperm.xlu0 %27, %v23
    %v29 = vpop.permute.xlu0 %28
    %30 = vset.pattern.permute.xlu0 0
    %31 = vperm.xlu0 %30, %v24
    %v32 = vpop.permute.xlu0 %31
    %vm33 = vcmp.eq.s32.totalorder %v26, %v29
    %vm34 = vcmp.eq.s32.totalorder %v26, %v32
    %v35 = vsel %vm33, 1, 0
    %v36 = vsel %vm34, 1, 0
    %v37 = vcvt.s32.f32 %v35
    %v38 = vcvt.s32.f32 %v36
    %v39 = vadd.f32 %v37, 0.0
    %v40 = vadd.f32 %v38, 0.0
    %41 = vset.pattern.permute.xlu0 1
    %42 = vperm.xlu0 %41, %v23
    %v43 = vpop.permute.xlu0 %42
    %44 = vset.pattern.permute.xlu0 1
    %45 = vperm.xlu0 %44, %v24
    %v46 = vpop.permute.xlu0 %45
    %vm47 = vcmp.eq.s32.totalorder %v26, %v43
    %vm48 = vcmp.eq.s32.totalorder %v26, %v46
    %v49 = vsel %vm47, 1, 0
    %v50 = vsel %vm48, 1, 0
    %v51 = vcvt.s32.f32 %v49
    %v52 = vcvt.s32.f32 %v50
    %v53 = vadd.f32 %v39, %v51
    %v54 = vadd.f32 %v40, %v52
    %55 = vset.pattern.permute.xlu0 2
    %56 = vperm.xlu0 %55, %v23
    %v57 = vpop.permute.xlu0 %56
    %58 = vset.pattern.permute.xlu0 2
    %59 = vperm.xlu0 %58, %v24
    %v60 = vpop.permute.xlu0 %59
    %vm61 = vcmp.eq.s32.totalorder %v26, %v57
    %vm62 = vcmp.eq.s32.totalorder %v26, %v60
    %v63 = vsel %vm61, 1, 0
    %v64 = vsel %vm62, 1, 0
    %v65 = vcvt.s32.f32 %v63
    %v66 = vcvt.s32.f32 %v64
    %v67 = vadd.f32 %v53, %v65
    %v68 = vadd.f32 %v54, %v66
    %69 = vset.pattern.permute.xlu0 3
    %70 = vperm.xlu0 %69, %v23
    %v71 = vpop.permute.xlu0 %70
    %72 = vset.pattern.permute.xlu0 3
    %73 = vperm.xlu0 %72, %v24
    %v74 = vpop.permute.xlu0 %73
    %vm75 = vcmp.eq.s32.totalorder %v26, %v71
    %vm76 = vcmp.eq.s32.totalorder %v26, %v74
    %v77 = vsel %vm75, 1, 0
    %v78 = vsel %vm76, 1, 0
    %v79 = vcvt.s32.f32 %v77
    %v80 = vcvt.s32.f32 %v78
    %v81 = vadd.f32 %v67, %v79
    %v82 = vadd.f32 %v68, %v80
    %83 = vset.pattern.permute.xlu0 4
    %84 = vperm.xlu0 %83, %v23
    %v85 = vpop.permute.xlu0 %84
    %86 = vset.pattern.permute.xlu0 4
    %87 = vperm.xlu0 %86, %v24
    %v88 = vpop.permute.xlu0 %87
    %vm89 = vcmp.eq.s32.totalorder %v26, %v85
    %vm90 = vcmp.eq.s32.totalorder %v26, %v88
    %v91 = vsel %vm89, 1, 0
    %v92 = vsel %vm90, 1, 0
    %v93 = vcvt.s32.f32 %v91
    %v94 = vcvt.s32.f32 %v92
    %v95 = vadd.f32 %v81, %v93
    %v96 = vadd.f32 %v82, %v94
    %v97 = vld [vmem:[#allocation2] sm:$0xff]
    %v98 = vld [vmem:[#allocation2 + $0x8] sm:$0xff]
    %v99 = vld [vmem:[%s1] sm:$0xff]
    %v100 = vld [vmem:[%s1 + $0x8] sm:$0xff]
    %v101 = vld [vmem:[%s1 + $0x10] sm:$0xff]
    %v102 = vld [vmem:[%s1 + $0x18] sm:$0xff]
    %v103 = vld [vmem:[%s1 + $0x20] sm:$0xff]
    %v104 = vld [vmem:[%s1 + $0x28] sm:$0xff]
    %v105 = vld [vmem:[%s1 + $0x30] sm:$0xff]
    %vm106 = vcmask 457728
    %v108 = vsel %vm106, %v95, 0
    %v111 = vsel %vm106, %v96, 0
    %113 = vmatpush.msra.mxu0 0.0
    %114 = vmatpush.msra.mxu0 0.0
    %115 = vmatpush.msra.mxu0 0.0
    %116 = vmatpush.msra.mxu0 0.0
    %117 = vmatpush.msra.mxu0 0.0
    %118 = vmatpush.msra.mxu0 0.0
    %119 = vmatpush.msra.mxu0 0.0
    %120 = vmatpush.msra.mxu0 0.0
    %121 = vmatpush.msra.mxu0 0.0
    %122 = vmatpush.msra.mxu0 %v105
    %123 = vmatpush.msra.mxu0 %v104
    %124 = vmatpush.msra.mxu0 %v103
    %125 = vmatpush.msra.mxu0 %v102
    %126 = vmatpush.msra.mxu0 %v101
    %127 = vmatpush.msra.mxu0 %v100
    %128 = vmatpush.msra.mxu0 %v99
    %129 = vmatmul.f32.gmra.mxu0 %v108
    %v130 = vpop.f32.mrf.mxu0
    %v131 = vadd.f32 0.0, %v130
    %132 = vmatmul.f32.gmra.mxu0 %v111
    %v133 = vpop.f32.mrf.mxu0
    %v134 = vadd.f32 0.0, %v133
    %135 = vdwg.mxu0
    %v136 = vadd.f32 %v97, %v131
    %v137 = vadd.f32 %v98, %v134
    %vm138 = vcmask 261120
    %139 = vst.msk [vmem:[#allocation2] sm:$0xff] %vm138, %v136
    %140 = vst.msk [vmem:[#allocation2 + $0x8] sm:$0xff] %vm138, %v137
    // Predicated region
    $region14: #{tpu_custom_call.1} parent=1 // pred_check
      %p141 = pneg %p14
    $region15: #{tpu_custom_call.1} parent=1 // pred_check_branch
      %143 = sbr.rel (%p141) target = $region17
    $region16: #{tpu_custom_call.1} parent=1 // pred_region
      %vm144 = vcmp.ge.s32.totalorder %v12, 0
      %vm145 = vcmp.ge.s32.totalorder %v13, 0
      %v146 = vsel %vm144, 1, 0
      %v147 = vsel %vm145, 1, 0
      %v148 = vcvt.s32.f32 %v146
      %v149 = vcvt.s32.f32 %v147
      %vm150 = vcmask 39936
      %v151 = vsel %vm150, %v148, 0.0
      %152 = vadd.xlane.f32.xlu0 %v151
      %v153 = vpop.xlane.xlu0 %152
      %v154 = vsel %vm150, %v149, 0.0
      %155 = vadd.xlane.f32.xlu0 %v154
      %v156 = vpop.xlane.xlu0 %155
      %v157 = vld [vmem:[#allocation2] sm:$0xff]
      %v158 = vld [vmem:[#allocation2 + $0x8] sm:$0xff]
      %v159 = vmax.f32 %v153, 1.0
      %v160 = vmax.f32 %v156, 1.0
      %v161 = vrcp.pop %v159
      %v162 = vmul.f32 %v159, %v161
      %v163 = vsub.f32 1.0, %v162
      %v164 = vmul.f32 %v161, %v163
      %v165 = vadd.f32 %v161, %v164
      %vm166 = vweird.f32 %v159
      %vm167 = vweird.f32 %v161
      %vm168 = vmor %vm166, %vm167
      %v169 = vsel %vm168, %v161, %v165
      %v170 = vand.u32 2147483647, %v159
      %vm171 = vcmp.eq.f32.partialorder %v170, 8.507059e+37
      %v172 = vand.u32 %v159, 2147483648
      %v173 = vor.u32 1.1754944e-38, %v172
      %v174 = vsel %vm171, %v173, %v169
      %v175 = vmul.f32 %v157, %v174
      %v176 = vrcp.pop %v160
      %v177 = vmul.f32 %v160, %v176
      %v178 = vsub.f32 1.0, %v177
      %v179 = vmul.f32 %v176, %v178
      %v180 = vadd.f32 %v176, %v179
      %vm181 = vweird.f32 %v160
      %vm182 = vweird.f32 %v176
      %vm183 = vmor %vm181, %vm182
      %v184 = vsel %vm183, %v176, %v180
      %v185 = vand.u32 2147483647, %v160
      %vm186 = vcmp.eq.f32.partialorder %v185, 8.507059e+37
      %v187 = vand.u32 %v160, 2147483648
      %v188 = vor.u32 1.1754944e-38, %v187
      %v189 = vsel %vm186, %v188, %v184
      %v190 = vmul.f32 %v158, %v189
      %191 = vst.msk [vmem:[#allocation2] sm:$0xff] %vm138, %v175
      %192 = vst.msk [vmem:[#allocation2 + $0x8] sm:$0xff] %vm138, %v190
    $region17: #{tpu_custom_call.1} parent=1 // pred_fallthru
      _
    // Predicated region
    $region18: #{tpu_custom_call.1} parent=1 // pred_check
      _
    $region19: #{tpu_custom_call.1} parent=1 // pred_check_branch
      %194 = sbr.rel (0) target = $region21
    $region20: #{tpu_custom_call.1} parent=1 // pred_region
      %196 = vsyncadd [#allocation3], 0
      %s197 = sshll.u32 [#allocation2], 4
      %s198 = int_to_ptr.vmem [resolvable:$true] %s197
      %s199 = sshll.u32 %s2, 4
      %s200 = int_to_ptr.hbm [resolvable:$true] %s199
      %205 = dma.vmem_to_hbm [thread:$0]  %s198, 256, %s200, [#allocation3], 128, 128, 8
    $region21: #{tpu_custom_call.1} parent=1 // pred_fallthru
      _
    // Predicated region
    $region22: #{tpu_custom_call.1} parent=1 // pred_check
      _
    $region23: #{tpu_custom_call.1} parent=1 // pred_check_branch
      %207 = sbr.rel (0) target = $region25
    $region24: #{tpu_custom_call.1} parent=1 // pred_region
      %209 = dma.done [#allocation3], 256
    $region25: #{tpu_custom_call.1} parent=1 // pred_fallthru
      _
    %210 = vsyncpa [#allocation3], 1

</llo_original>
